<compile_context>
chip_gen: v7x
topology: tpu7x:2x2x1
jax: 0.10.0
libtpu: 0.0.40
codegen_flags: <defaults>
</compile_context>

<pallas_src>
import jax
import jax.numpy as jnp
from jax.experimental import pallas as pl
from jax.experimental.pallas import tpu as pltpu


def _square_kernel(x_ref, o_ref):
    x = x_ref[...]
    o_ref[...] = x * x


def _sublane_multiple(dtype) -> int:
    itemsize = jnp.dtype(dtype).itemsize
    if itemsize >= 4:
        return 8
    if itemsize == 2:
        return 16
    return 32


def _round_up(x: int, m: int) -> int:
    return ((x + m - 1) // m) * m


def square(t: jax.Array, *, target_block_bytes: int = 2 * 1024 * 1024) -> jax.Array:
    """Elementwise square of `t` (any shape/dtype) via a Pallas TPU kernel."""
    orig_shape = t.shape
    dtype = t.dtype
    n = t.size
    if n == 0:
        return jnp.reshape(t, orig_shape)

    itemsize = jnp.dtype(dtype).itemsize
    sub_mult = _sublane_multiple(dtype)

    # ---- choose a lane-dense 2-D factorization (prefer zero padding) -------
    lanes = None
    for cand in (1024, 512, 256, 128):
        if n % cand == 0:
            lanes = cand
            break

    padded = lanes is None
    if padded:
        # Flattened size is not a multiple of 128: pad once (zero-pad is
        # benign for x*x and the tail is sliced off afterwards).
        lanes = 128
        rows = pl.cdiv(n, lanes)
        flat = jnp.reshape(t, (-1,))
        pad = rows * lanes - n
        flat = jnp.concatenate([flat, jnp.zeros((pad,), dtype=dtype)])
        x2d = jnp.reshape(flat, (rows, lanes))
    else:
        rows = n // lanes
        x2d = jnp.reshape(t, (rows, lanes))

    # ---- row-tile selection: ~target_block_bytes per block -----------------
    tile = max(target_block_bytes // (lanes * itemsize), sub_mult)
    tile = _round_up(tile, sub_mult)

    if tile >= rows:
        if rows > 2 * sub_mult:
            # Big enough to split into (at least) two blocks so a parallel
            # grid can be sharded across the two TensorCores on v7x.
            tile = _round_up(pl.cdiv(rows, 2), sub_mult)
        else:
            # Full-extent block (always a legal block dim, even when `rows`
            # is not a multiple of the sublane packing).
            tile = rows

    grid = (pl.cdiv(rows, tile),)

    out2d = pl.pallas_call(
        _square_kernel,
        out_shape=jax.ShapeDtypeStruct((rows, lanes), dtype),
        grid_spec=pltpu.PrefetchScalarGridSpec(
            num_scalar_prefetch=0,
            grid=grid,
            in_specs=[pl.BlockSpec((tile, lanes), lambda i: (i, 0))],
            out_specs=pl.BlockSpec((tile, lanes), lambda i: (i, 0)),
        ),
        compiler_params=pltpu.CompilerParams(
            dimension_semantics=("parallel",),
        ),
    )(x2d)

    if padded:
        out_flat = jnp.reshape(out2d, (-1,))[:n]
        return jnp.reshape(out_flat, orig_shape)
    return jnp.reshape(out2d, orig_shape)


if __name__ == "__main__":
    key = jax.random.PRNGKey(0)

    # Primary test: NCHW input like the PyTorch module (batch=2, ch=4, 16x16).
    x = jax.random.normal(key, (2, 4, 16, 16), dtype=jnp.float32)
    y = jax.block_until_ready(square(x))
    ref = x ** 2
    assert y.shape == x.shape and y.dtype == x.dtype
    assert jnp.allclose(y, ref, atol=1e-6, rtol=1e-6)

    # Multi-block grid path (rows split across >= 2 grid steps).
    k1, k2 = jax.random.split(key)
    x_big = jax.random.normal(k1, (64, 1024), dtype=jnp.float32)
    y_big = jax.block_until_ready(square(x_big))
    assert jnp.allclose(y_big, x_big ** 2, atol=1e-6, rtol=1e-6)

    # Ragged size (not a multiple of 128) -> padded fallback path.
    x_odd = jax.random.normal(k2, (3, 5, 7), dtype=jnp.float32)
    y_odd = jax.block_until_ready(square(x_odd))
    assert jnp.allclose(y_odd, x_odd ** 2, atol=1e-6, rtol=1e-6)

    # bf16 path (16-row sublane packing rule).
    x_bf16 = jax.random.normal(key, (2, 4, 16, 16), dtype=jnp.bfloat16)
    y_bf16 = jax.block_until_ready(square(x_bf16))
    assert jnp.allclose(
        y_bf16.astype(jnp.float32), (x_bf16 ** 2).astype(jnp.float32),
        atol=1e-2, rtol=1e-2,
    )

    print("KERNEL_OK")
</pallas_src>

<mosaic_0001>
module attributes {stable_mosaic.version = 11 : i64} {
  func.func @_square_kernel(%arg0: i32, %arg1: memref<2x1024xf32, #tpu.memory_space<vmem>>, %arg2: memref<2x1024xf32, #tpu.memory_space<vmem>>) attributes {dimension_semantics = [#tpu.dimension_semantics<parallel>], iteration_bounds = array<i64: 1>, scalar_prefetch = 0 : i64, scratch_operands = 0 : i64, tpu.core_type = #tpu.core_type<tc>, window_params = [{transform_indices = @transform_0, window_bounds = array<i64: 2, 1024>}, {transform_indices = @transform_1, window_bounds = array<i64: 2, 1024>}]} {
    %c0 = arith.constant 0 : index
    %c0_0 = arith.constant 0 : index
    %0 = vector.load %arg1[%c0, %c0_0] : memref<2x1024xf32, #tpu.memory_space<vmem>>, vector<2x1024xf32>
    %1 = arith.mulf %0, %0 : vector<2x1024xf32>
    %c0_1 = arith.constant 0 : index
    %c0_2 = arith.constant 0 : index
    %2 = vector.load %arg2[%c0_1, %c0_2] : memref<2x1024xf32, #tpu.memory_space<vmem>>, vector<2x1024xf32>
    tpu.vector_store %arg2[%c0_1, %c0_2], %1 {strides = array<i32>} : memref<2x1024xf32, #tpu.memory_space<vmem>>, vector<2x1024xf32>,
    return
  }
  func.func @transform_0(%arg0: i32) -> (i32, i32) {
    %c0_i32 = arith.constant 0 : i32
    %c0_i32_0 = arith.constant 0 : i32
    return %arg0, %c0_i32 : i32, i32
  }
  func.func @transform_1(%arg0: i32) -> (i32, i32) {
    %c0_i32 = arith.constant 0 : i32
    %c0_i32_0 = arith.constant 0 : i32
    return %arg0, %c0_i32 : i32, i32
  }
}

</mosaic_0001>

<llo_original>
// kernel: tpu_custom_call.1
$region0: #{tpu_custom_call.1}
  #allocation0 [shape = 'u32[]', space=smem, size = 0x4, offset = 0x4, fixed_abs, tag = 'smem constant byte address 0x4 - core index']
  #allocation1 [shape = 'u32[144,128]{1,0:T(1,128)}', space=vmem, size = 0x12000, scoped, tag = 'internal scratch']
  %s0 = inlined_call_operand.hbm [shape: f32[2,1024], index: 0, kind: input, shape index: {}]
  %s1 = inlined_call_operand.hbm [shape: f32[2,1024], index: 1, kind: output, shape index: {}]
  %s2 = sld [smem:[#allocation0]]
  $region18: #{tpu_custom_call.1} parent=0
    _
  %s4 = ssub.s32 1, %s2
  %s5 = scalar_select 0, %s4, %s2
  $region1: #{tpu_custom_call.1} parent=0
    #allocation2 [shape = 'u8[8192]{0}', space=vmem, size = 0x2000, scoped, tag = 'input window, operand 0, single buffered']
    #allocation3 [shape = 's32[1]{0}', space=sflag, size = 0x4, scoped, tag = 'scoped memory for tpu_custom_call.1']
    #allocation4 [shape = 's32[1]{0}', space=sflag, size = 0x4, scoped, tag = 'scoped memory for tpu_custom_call.1']
    #allocation5 [shape = 'u8[8192]{0}', space=vmem, size = 0x2000, scoped, tag = 'output window, operand 0, single buffered']
    %6 = vsyncpa [#allocation3], 0
    %7 = vsyncpa [#allocation4], 0
    // Predicated region
    $region2: #{tpu_custom_call.1} parent=1 // pred_check
      _
    $region3: #{tpu_custom_call.1} parent=1 // pred_check_branch
      %9 = sbr.rel (0) target = $region5
    $region4: #{tpu_custom_call.1} parent=1 // pred_region
      %s11 = ssub.s32 256, 256
      %12 = vsyncadd [#allocation3], %s11
      %s14 = sshll.u32 [#allocation2], 4
      %s15 = int_to_ptr.vmem [resolvable:$true] %s14
      %17 = dma.hbm_to_vmem [thread:$0]  %s0, 256, %s15, [#allocation3]
    $region5: #{tpu_custom_call.1} parent=1 // pred_fallthru
      _
    // Predicated region
    $region6: #{tpu_custom_call.1} parent=1 // pred_check
      _
    $region7: #{tpu_custom_call.1} parent=1 // pred_check_branch
      %19 = sbr.rel (0) target = $region9
    $region8: #{tpu_custom_call.1} parent=1 // pred_region
      %20 = dma.done [#allocation3], 256
    $region9: #{tpu_custom_call.1} parent=1 // pred_fallthru
      _
    %v21 = vld [vmem:[#allocation2] sm:$0xff]
    %v22 = vld [vmem:[#allocation2 + $0x8] sm:$0xff]
    %v23 = vmul.f32 %v21, %v21
    %v24 = vmul.f32 %v22, %v22
    %25 = vst [vmem:[#allocation5] sm:$0xff] %v23
    %26 = vst [vmem:[#allocation5 + $0x8] sm:$0xff] %v24
    // Predicated region
    $region10: #{tpu_custom_call.1} parent=1 // pred_check
      _
    $region11: #{tpu_custom_call.1} parent=1 // pred_check_branch
      %28 = sbr.rel (0) target = $region13
    $region12: #{tpu_custom_call.1} parent=1 // pred_region
      %s30 = ssub.s32 256, 256
      %31 = vsyncadd [#allocation4], %s30
      %s33 = sshll.u32 [#allocation5], 4
      %s34 = int_to_ptr.vmem [resolvable:$true] %s33
      %36 = dma.vmem_to_hbm [thread:$0]  %s34, 256, %s1, [#allocation4]
    $region13: #{tpu_custom_call.1} parent=1 // pred_fallthru
      _
    // Predicated region
    $region14: #{tpu_custom_call.1} parent=1 // pred_check
      _
    $region15: #{tpu_custom_call.1} parent=1 // pred_check_branch
      %38 = sbr.rel (0) target = $region17
    $region16: #{tpu_custom_call.1} parent=1 // pred_region
      %39 = dma.done [#allocation4], 256
    $region17: #{tpu_custom_call.1} parent=1 // pred_fallthru
      _
    %40 = vsyncpa [#allocation3], 1
    %41 = vsyncpa [#allocation4], 1

</llo_original>
